<compile_context>
chip_gen: v7x
topology: tpu7x:2x2x1
jax: 0.10.0
libtpu: 0.0.40
codegen_flags: <defaults>
</compile_context>

<pallas_src>
import functools

import jax
import jax.numpy as jnp
from jax.experimental import pallas as pl
from jax.experimental.pallas import tpu as pltpu


def _group_shuffle_kernel(x_ref, o_ref, *, groups, cpg):
    # x_ref / o_ref: (1, C, tT) VMEM tiles. One vectorized sublane permutation
    # (strided gather over source channels, dense contiguous store).
    C = groups * cpg
    tT = x_ref.shape[-1]
    x = x_ref[0]  # (C, tT)
    o_ref[0] = x.reshape(groups, cpg, tT).swapaxes(0, 1).reshape(C, tT)


def _pick_time_tile(C, T, itemsize):
    """Largest 128-multiple tile that divides T and keeps ~4 double-buffered
    blocks within a conservative (v5e-safe, v7x-safe) VMEM budget."""
    if T % 128 != 0:
        # Ragged lane axis: fall back to the full extent (allowed by the
        # BlockSpec rules when the block dim equals the array dim). Fine for
        # small/odd T; realistic Jasper T should be padded to 128 upstream.
        return T
    budget_bytes = 8 * 1024 * 1024          # total for 2(in)+2(out) buffers
    max_tT = (budget_bytes // (4 * C * itemsize)) // 128 * 128
    max_tT = max(128, max_tT)
    tT = min(T, max_tT)
    while T % tT:                            # snap down to a divisor of T
        tT -= 128                            # terminates: 128 divides T
    return tT


def group_shuffle(x, groups, *, time_tile=None):
    """Pallas TPU implementation of GroupShuffle.forward for NCT inputs."""
    B, C, T = x.shape
    assert C % groups == 0, "channels must be divisible by groups"
    cpg = C // groups
    itemsize = jnp.dtype(x.dtype).itemsize

    tT = time_tile if time_tile is not None else _pick_time_tile(C, T, itemsize)
    assert T % tT == 0, "time tile must divide T"
    grid = (B, T // tT)

    kernel = functools.partial(_group_shuffle_kernel, groups=groups, cpg=cpg)
    return pl.pallas_call(
        kernel,
        out_shape=jax.ShapeDtypeStruct((B, C, T), x.dtype),
        grid=grid,
        in_specs=[pl.BlockSpec((1, C, tT), lambda b, t: (b, 0, t))],
        out_specs=pl.BlockSpec((1, C, tT), lambda b, t: (b, 0, t)),
        compiler_params=pltpu.CompilerParams(
            dimension_semantics=("parallel", "parallel"),
            vmem_limit_bytes=32 * 1024 * 1024,
        ),
        cost_estimate=pl.CostEstimate(
            flops=0,
            transcendentals=0,
            bytes_accessed=2 * B * C * T * itemsize,
        ),
    )(x)


def group_shuffle_ref(x, groups):
    """Pure-JAX reference matching the PyTorch semantics exactly."""
    B, C, T = x.shape
    cpg = C // groups
    y = x.reshape(B, groups, cpg, T)
    y = jnp.swapaxes(y, 1, 2)
    return y.reshape(B, C, T)


if __name__ == "__main__":
    key = jax.random.PRNGKey(0)

    # Case 1: tiny shape with ragged T (full-extent lane dim path).
    groups1 = 2
    B1, C1, T1 = 2, 8, 16
    k1, k2 = jax.random.split(key)
    x1 = jax.random.normal(k1, (B1, C1, T1), dtype=jnp.float32)
    out1 = jax.block_until_ready(group_shuffle(x1, groups1))
    ref1 = group_shuffle_ref(x1, groups1)
    assert out1.shape == (B1, C1, T1) and out1.dtype == x1.dtype
    assert jnp.allclose(out1, ref1), "Pallas GroupShuffle mismatch (case 1)"

    # Case 2: small 128-multiple T exercising the tiled / vectorized path.
    groups2 = 4
    B2, C2, T2 = 2, 16, 256
    x2 = jax.random.normal(k2, (B2, C2, T2), dtype=jnp.float32)
    out2 = jax.block_until_ready(group_shuffle(x2, groups2))
    ref2 = group_shuffle_ref(x2, groups2)
    assert out2.shape == (B2, C2, T2) and out2.dtype == x2.dtype
    assert jnp.allclose(out2, ref2), "Pallas GroupShuffle mismatch (case 2)"

    print("KERNEL_OK")
</pallas_src>

<mosaic_0001>
module attributes {stable_mosaic.version = 11 : i64} {
  func.func @_group_shuffle_kernel(%arg0: i32, %arg1: i32, %arg2: memref<1x8x16xf32, #tpu.memory_space<vmem>>, %arg3: memref<1x8x16xf32, #tpu.memory_space<vmem>>) attributes {dimension_semantics = [#tpu.dimension_semantics<parallel>, #tpu.dimension_semantics<parallel>], iteration_bounds = array<i64: 2, 1>, scalar_prefetch = 0 : i64, scratch_operands = 0 : i64, tpu.core_type = #tpu.core_type<tc>, window_params = [{transform_indices = @transform_0, window_bounds = array<i64: 1, 8, 16>}, {transform_indices = @transform_1, window_bounds = array<i64: 1, 8, 16>}]} {
    %c0 = arith.constant 0 : index
    %c0_0 = arith.constant 0 : index
    %c0_1 = arith.constant 0 : index
    %0 = vector.load %arg2[%c0, %c0_0, %c0_1] : memref<1x8x16xf32, #tpu.memory_space<vmem>>, vector<1x8x16xf32>
    %1 = vector.shape_cast %0 : vector<1x8x16xf32> to vector<8x16xf32>
    %2 = vector.shape_cast %1 : vector<8x16xf32> to vector<2x4x16xf32>
    %3 = tpu.transpose %2, [1, 0, 2] : vector<2x4x16xf32> -> vector<4x2x16xf32>
    %4 = vector.shape_cast %3 : vector<4x2x16xf32> to vector<8x16xf32>
    %c0_2 = arith.constant 0 : index
    %c0_3 = arith.constant 0 : index
    %c0_4 = arith.constant 0 : index
    %5 = vector.load %arg3[%c0_2, %c0_3, %c0_4] : memref<1x8x16xf32, #tpu.memory_space<vmem>>, vector<1x8x16xf32>
    %6 = vector.shape_cast %5 : vector<1x8x16xf32> to vector<8x16xf32>
    %7 = vector.shape_cast %4 : vector<8x16xf32> to vector<1x8x16xf32>
    tpu.vector_store %arg3[%c0_2, %c0_3, %c0_4], %7 {strides = array<i32>} : memref<1x8x16xf32, #tpu.memory_space<vmem>>, vector<1x8x16xf32>,
    return
  }
  func.func @transform_0(%arg0: i32, %arg1: i32) -> (i32, i32, i32) {
    %c0_i32 = arith.constant 0 : i32
    %c0_i32_0 = arith.constant 0 : i32
    return %arg0, %c0_i32, %arg1 : i32, i32, i32
  }
  func.func @transform_1(%arg0: i32, %arg1: i32) -> (i32, i32, i32) {
    %c0_i32 = arith.constant 0 : i32
    %c0_i32_0 = arith.constant 0 : i32
    return %arg0, %c0_i32, %arg1 : i32, i32, i32
  }
}

</mosaic_0001>

<llo_original>
// kernel: tpu_custom_call.1
$region0: #{tpu_custom_call.1}
  #allocation0 [shape = 'u32[]', space=smem, size = 0x4, offset = 0x4, fixed_abs, tag = 'smem constant byte address 0x4 - core index']
  #allocation1 [shape = 'u32[144,128]{1,0:T(1,128)}', space=vmem, size = 0x12000, scoped, tag = 'internal scratch']
  %s0 = inlined_call_operand.hbm [shape: f32[2,8,16], index: 0, kind: input, shape index: {}]
  %s1 = inlined_call_operand.hbm [shape: f32[2,8,16], index: 1, kind: output, shape index: {}]
  %s2 = sld [smem:[#allocation0]]
  $region41: #{tpu_custom_call.1} parent=0
    _
  %s4 = ssub.s32 1, %s2
  %s5 = scalar_select 0, %s4, %s2
  $region1: #{tpu_custom_call.1} parent=0
    #allocation2 [shape = 'u8[8192]{0}', space=vmem, size = 0x2000, scoped, tag = 'input window, operand 0']
    #allocation3 [shape = 's32[2]{0}', space=sflag, size = 0x8, scoped, tag = 'scoped memory for tpu_custom_call.1']
    #allocation4 [shape = 's32[2]{0}', space=sflag, size = 0x8, scoped, tag = 'scoped memory for tpu_custom_call.1']
    #allocation5 [shape = 'u8[8192]{0}', space=vmem, size = 0x2000, scoped, tag = 'output window, operand 0']
    %6 = vsyncpa [#allocation3], 0
    %s7 = scalar_lea.sflag [#allocation3], 1
    %8 = vsyncpa %s7, 0
    %9 = vsyncpa [#allocation4], 0
    %s10 = scalar_lea.sflag [#allocation4], 1
    %11 = vsyncpa %s10, 0
    loop: start=0, step=1, limit=4
    $region2: #{tpu_custom_call.1} parent=1 // loop_pre_header
      _
    $region3: #{tpu_custom_call.1} parent=1 // loop_header
      %s13 = sphi 0, %s17
      %p14 = scmp.ge.s32.totalorder %s13, 4
      %s20 = sphi 0, %s32
      %s21 = sphi 0, %s28
      %s22 = sphi 0, %s20
      %s23 = sphi 0, %s21
      %s24 = sphi 0, %s22
      %s25 = sphi 0, %s23
      %s37 = sphi 0, %s39
      %s40 = sphi 0, %s37
      %s41 = sphi 0, %s40
      %s57 = sphi 0, %s41
      %s65 = sphi 0, %s67
      %s68 = sphi 0, %s65
      %s69 = sphi 0, %s68
      %s85 = sphi 0, %s69
    $region4: #{tpu_custom_call.1} parent=1 // loop_header_branch
      %16 = sbr.rel (%p14) target = $region8
    $region5: #{tpu_custom_call.1} parent=1 // loop_body
      %s18 = ssub.s32 %s13, 1
      %s19 = ssub.s32 %s13, 2
      %s26 = sadd.s32 1, %s21
      %p27 = scmp.ge.s32.totalorder %s26, 1
      %s28 = scalar_select %p27, 0, %s26
      %s29 = sadd.s32 1, %s20
      %s30 = scalar_select %p27, %s29, %s20
      %p31 = scmp.ge.s32.totalorder %s30, 2
      %s32 = scalar_select %p31, 0, %s30
      %s33 = ssub.s32 %s20, %s32
      %s34 = ssub.s32 %s21, %s28
      %s35 = sor.u32 %s33, %s34
      %p36 = scmp.eq.s32.totalorder %s35, 0
      %s38 = sadd.s32 %s37, 1
      %s39 = scalar_select %p36, %s37, %s38
      %p42 = pneg %p36
      %p43 = scmp.eq.s32.totalorder %s13, 1
      %p44 = por %p42, %p43
      %p45 = scmp.ne.s32.totalorder %s37, %s40
      %p46 = scmp.eq.s32.totalorder %s13, 0
      %p47 = por %p45, %p46
      %p48 = scmp.ne.s32.totalorder %s37, %s40
      %p49 = scmp.eq.s32.totalorder %s18, 1
      %p50 = por %p48, %p49
      %p51 = scmp.ne.s32.totalorder %s40, %s41
      %p52 = scmp.eq.s32.totalorder %s18, 0
      %p53 = por %p51, %p52
      %p54 = scmp.ne.s32.totalorder %s40, %s41
      %p55 = scmp.eq.s32.totalorder %s19, 1
      %p56 = por %p54, %p55
      %p58 = scmp.ne.s32.totalorder %s41, %s57
      %p59 = scmp.eq.s32.totalorder %s19, 0
      %p60 = por %p58, %p59
      %s61 = ssub.s32 %s20, %s32
      %s62 = ssub.s32 %s21, %s28
      %s63 = sor.u32 %s61, %s62
      %p64 = scmp.eq.s32.totalorder %s63, 0
      %s66 = sadd.s32 %s65, 1
      %s67 = scalar_select %p64, %s65, %s66
      %p70 = pneg %p64
      %p71 = scmp.eq.s32.totalorder %s13, 1
      %p72 = por %p70, %p71
      %p73 = scmp.ne.s32.totalorder %s65, %s68
      %p74 = scmp.eq.s32.totalorder %s13, 0
      %p75 = por %p73, %p74
      %p76 = scmp.ne.s32.totalorder %s65, %s68
      %p77 = scmp.eq.s32.totalorder %s18, 1
      %p78 = por %p76, %p77
      %p79 = scmp.ne.s32.totalorder %s68, %s69
      %p80 = scmp.eq.s32.totalorder %s18, 0
      %p81 = por %p79, %p80
      %p82 = scmp.ne.s32.totalorder %s68, %s69
      %p83 = scmp.eq.s32.totalorder %s19, 1
      %p84 = por %p82, %p83
      %p86 = scmp.ne.s32.totalorder %s69, %s85
      %p87 = scmp.eq.s32.totalorder %s19, 0
      %p88 = por %p86, %p87
      %p89 = scmp.le.s32.totalorder 1, %s13
      %p90 = scmp.lt.s32.totalorder %s13, 3
      %p91 = pnand %p89, %p90
      %p92 = pneg %p91
      // Predicated region
      $region9: #{tpu_custom_call.1} parent=5 // pred_check
        _
      $region10: #{tpu_custom_call.1} parent=5 // pred_check_branch
        %94 = sbr.rel (%p91) target = $region12
      $region11: #{tpu_custom_call.1} parent=5 // pred_region
        %s95 = ssub.s32 %s13, 1
      $region12: #{tpu_custom_call.1} parent=5 // pred_fallthru
        _
      %p96 = scmp.lt.s32.totalorder %s13, 2
      // Predicated region
      $region13: #{tpu_custom_call.1} parent=5 // pred_check
        %p97 = pneg %p96
      $region14: #{tpu_custom_call.1} parent=5 // pred_check_branch
        %99 = sbr.rel (%p97) target = $region16
      $region15: #{tpu_custom_call.1} parent=5 // pred_region
        // Predicated region
        $region17: #{tpu_custom_call.1} parent=15 // pred_check
          %p100 = pneg %p47
        $region18: #{tpu_custom_call.1} parent=15 // pred_check_branch
          %102 = sbr.rel (%p100) target = $region20
        $region19: #{tpu_custom_call.1} parent=15 // pred_region
          %s103 = sand.u32 %s37, 1
          %s104 = scalar_lea.sflag [#allocation3], %s103
          %s105 = sand.u32 %s37, 1
          %s106 = smul.addr %s105, 8
          %s107 = scalar_lea.vmem [#allocation2], %s106
          %s109 = ssub.s32 128, 128
          %110 = vsyncadd %s104, %s109
          %s111 = sadd.s32 %s21, %s20
          %s112 = smul.addr %s111, 128
          %s113 = scalar_lea.hbm %s0, %s112
          %s115 = sshll.u32 %s107, 4
          %s116 = int_to_ptr.vmem [resolvable:$true] %s115
          %118 = dma.hbm_to_vmem [thread:$0]  %s113, 128, %s116, %s104
        $region20: #{tpu_custom_call.1} parent=15 // pred_fallthru
          _
      $region16: #{tpu_custom_call.1} parent=5 // pred_fallthru
        _
      %p119 = scmp.le.s32.totalorder 1, %s13
      %p120 = scmp.lt.s32.totalorder %s13, 3
      %p121 = pnand %p119, %p120
      %p122 = pneg %p121
      // Predicated region
      $region21: #{tpu_custom_call.1} parent=5 // pred_check
        _
      $region22: #{tpu_custom_call.1} parent=5 // pred_check_branch
        %124 = sbr.rel (%p121) target = $region24
      $region23: #{tpu_custom_call.1} parent=5 // pred_region
        %s125 = ssub.s32 %s13, 1
        %s126 = sand.u32 %s40, 1
        %s127 = scalar_lea.sflag [#allocation3], %s126
        %s128 = sand.u32 %s40, 1
        %s129 = smul.addr %s128, 8
        %s130 = scalar_lea.vmem [#allocation2], %s129
        // Predicated region
        $region25: #{tpu_custom_call.1} parent=23 // pred_check
          %p131 = pneg %p53
        $region26: #{tpu_custom_call.1} parent=23 // pred_check_branch
          %133 = sbr.rel (%p131) target = $region28
        $region27: #{tpu_custom_call.1} parent=23 // pred_region
          %134 = dma.done %s127, 128
        $region28: #{tpu_custom_call.1} parent=23 // pred_fallthru
          _
        %s135 = sand.u32 %s40, 1
        %s136 = scalar_lea.sflag [#allocation3], %s135
        %s137 = sand.u32 %s40, 1
        %s138 = smul.addr %s137, 8
        %s139 = scalar_lea.vmem [#allocation2], %s138
        %p140 = pneg %p53
        %p141 = pneg %p50
        %p142 = pneg %p81
        %p143 = pneg %p78
        %s144 = sand.u32 %s68, 1
        %s145 = scalar_lea.sflag [#allocation4], %s144
        %s146 = sand.u32 %s68, 1
        %s147 = smul.addr %s146, 8
        %s148 = scalar_lea.vmem [#allocation5], %s147
        %v149 = vld [vmem:[%s130] sm:$0xff]
        %v151 = vcombine.high %v149, %v149
        %v153 = vunpack.c.l.s4 1983009808
        %v154 = vunpack.c.0.s8 %v153
        %v155 = vlaneseq
        %v156 = vshrl.u32 %v155, 7
        %v157 = vsub.s32 %v154, %v156
        %v158 = vrot.slane %v149, %v157
        %v161 = vunpack.c.l.s4 1983009808
        %v162 = vunpack.c.0.s8 %v161
        %v163 = vlaneseq
        %v164 = vshrl.u32 %v163, 7
        %v165 = vsub.s32 %v162, %v164
        %v166 = vrot.slane %v151, %v165
        %v167 = vcombine.low %v158, %v166
        %v168 = vcombine.high %v158, %v166
        %v170 = vunpack.c.l.s4 1934713408
        %v171 = vunpack.c.0.s8 %v170
        %v172 = vlaneseq
        %v173 = vshrl.u32 %v172, 7
        %v174 = vsub.s32 %v171, %v173
        %v175 = vrot.slane %v167, %v174
        %v177 = vunpack.c.l.s4 1934713408
        %v178 = vunpack.c.0.s8 %v177
        %v179 = vlaneseq
        %v180 = vshrl.u32 %v179, 7
        %v181 = vsub.s32 %v178, %v180
        %v182 = vrot.slane %v168, %v181
        %v183 = vcombine.high %v175, 0.0
        %v184 = vcombine.high %v182, 0.0
        %v189 = vcombine.low %v175, %v183
        %v190 = vcombine.low %v182, %v184
        %v192 = vunpack.c.l.s4 1983009808
        %v193 = vunpack.c.0.s8 %v192
        %v194 = vlaneseq
        %v195 = vshrl.u32 %v194, 7
        %v196 = vsub.s32 %v193, %v195
        %v197 = vrot.slane %v189, %v196
        %v199 = vunpack.c.l.s4 1983009808
        %v200 = vunpack.c.0.s8 %v199
        %v201 = vlaneseq
        %v202 = vshrl.u32 %v201, 7
        %v203 = vsub.s32 %v200, %v202
        %v204 = vrot.slane %v190, %v203
        %v205 = vcombine.low %v197, %v204
        %vm207 = vcmask 130048
        %208 = vst.msk [vmem:[%s148] sm:$0xff] %vm207, %v205
        %s209 = sand.u32 %s68, 1
        %s210 = scalar_lea.sflag [#allocation4], %s209
        %s211 = sand.u32 %s68, 1
        %s212 = smul.addr %s211, 8
        %s213 = scalar_lea.vmem [#allocation5], %s212
        // Predicated region
        $region29: #{tpu_custom_call.1} parent=23 // pred_check
          %p214 = pneg %p78
        $region30: #{tpu_custom_call.1} parent=23 // pred_check_branch
          %216 = sbr.rel (%p214) target = $region32
        $region31: #{tpu_custom_call.1} parent=23 // pred_region
          %s218 = ssub.s32 128, 128
          %219 = vsyncadd %s210, %s218
          %s220 = sadd.s32 %s23, %s22
          %s221 = smul.addr %s220, 128
          %s222 = scalar_lea.hbm %s1, %s221
          %s224 = sshll.u32 %s213, 4
          %s225 = int_to_ptr.vmem [resolvable:$true] %s224
          %227 = dma.vmem_to_hbm [thread:$0]  %s225, 128, %s222, %s210
        $region32: #{tpu_custom_call.1} parent=23 // pred_fallthru
          _
      $region24: #{tpu_custom_call.1} parent=5 // pred_fallthru
        _
      %p228 = scmp.le.s32.totalorder 2, %s13
      // Predicated region
      $region33: #{tpu_custom_call.1} parent=5 // pred_check
        %p229 = pneg %p228
      $region34: #{tpu_custom_call.1} parent=5 // pred_check_branch
        %231 = sbr.rel (%p229) target = $region36
      $region35: #{tpu_custom_call.1} parent=5 // pred_region
        %s232 = ssub.s32 %s13, 2
        // Predicated region
        $region37: #{tpu_custom_call.1} parent=35 // pred_check
          %p233 = pneg %p84
        $region38: #{tpu_custom_call.1} parent=35 // pred_check_branch
          %235 = sbr.rel (%p233) target = $region40
        $region39: #{tpu_custom_call.1} parent=35 // pred_region
          %s236 = sand.u32 %s69, 1
          %s237 = scalar_lea.sflag [#allocation4], %s236
          %s238 = sand.u32 %s69, 1
          %s239 = smul.addr %s238, 8
          %s240 = scalar_lea.vmem [#allocation5], %s239
          %241 = dma.done %s237, 128
        $region40: #{tpu_custom_call.1} parent=35 // pred_fallthru
          _
      $region36: #{tpu_custom_call.1} parent=5 // pred_fallthru
        _
    $region6: #{tpu_custom_call.1} parent=1 // loop_footer
      %s17 = sadd.s32 1, %s13
    $region7: #{tpu_custom_call.1} parent=1 // loop_footer_branch
      %12 = sbr.rel target = $region3
    $region8: #{tpu_custom_call.1} parent=1 // loop_exit
      _
    %242 = vsyncpa [#allocation3], 1
    %s243 = scalar_lea.sflag [#allocation3], 1
    %244 = vsyncpa %s243, 1
    %245 = vsyncpa [#allocation4], 1
    %s246 = scalar_lea.sflag [#allocation4], 1
    %247 = vsyncpa %s246, 1

</llo_original>
